<compile_context>
chip_gen: v6e
topology: v6e:2x2x1
jax: 0.10.0
libtpu: 0.0.40
codegen_flags: <defaults>
</compile_context>

<pallas_src>
import math
from functools import partial

import jax
import jax.numpy as jnp
from jax.experimental import pallas as pl
from jax.experimental.pallas import tpu as pltpu

_LANE = 128       # TPU lane width (last dim)
_SUBLANE = 8      # TPU sublane width (second-to-last dim)
_VMEM_LIMIT_CACHE = [None]


def _round_up(x, m):
    return ((x + m - 1) // m) * m


def _pad2d(a, rows, cols):
    r, c = a.shape
    if (r, c) == (rows, cols):
        return a
    return jnp.pad(a, ((0, rows - r), (0, cols - c)))


def _pad_last(a, width):
    if a.shape[-1] == width:
        return a
    pad = [(0, 0)] * (a.ndim - 1) + [(0, width - a.shape[-1])]
    return jnp.pad(a, pad)


def _row_tile(m, tm):
    """Big row tile by default (512), clamped so tiny batches do not over-pad."""
    return min(tm, _round_up(m, _SUBLANE))


def _vmem_limit_bytes():
    # v5e/v6e have 128 MiB physical VMEM -> ~96 MiB scoped; v7x has 64 MiB -> ~48 MiB.
    if _VMEM_LIMIT_CACHE[0] is None:
        limit = 64 * 1024 * 1024
        try:
            cap = getattr(pltpu.get_tpu_info(), "vmem_capacity_bytes", None)
            if cap:
                limit = int(min(96 * 1024 * 1024, cap * 3 // 4))
        except Exception:
            pass
        _VMEM_LIMIT_CACHE[0] = limit
    return _VMEM_LIMIT_CACHE[0]


def _params():
    return pltpu.CompilerParams(dimension_semantics=("parallel",),
                                vmem_limit_bytes=_vmem_limit_bytes())


# ---------------------------------------------------------------------------
# Linear projection kernel (bias-free nn.Linear):  y = x @ W
# Used once for W_q and once for the fused [W_k | W_v] projection per MHA.
# ---------------------------------------------------------------------------
def _linear_kernel(x_ref, w_ref, o_ref):
    o_ref[...] = jnp.dot(x_ref[...], w_ref[...],
                         preferred_element_type=jnp.float32).astype(o_ref.dtype)


def linear(x2d, w, *, tm=512, compute_dtype=None):
    M, K = x2d.shape
    Kw, N = w.shape
    assert K == Kw
    out_dtype = x2d.dtype
    Kp = _round_up(K, _LANE)
    Np = _round_up(N, _LANE)
    tm_eff = _row_tile(M, tm)
    Mp = _round_up(M, tm_eff)
    xp = _pad2d(x2d, Mp, Kp)
    wp = _pad2d(w, Kp, Np)
    if compute_dtype is not None:           # bf16 operands on v6e/v7x; f32 accumulation
        xp = xp.astype(compute_dtype)
        wp = wp.astype(compute_dtype)
    out = pl.pallas_call(
        _linear_kernel,
        out_shape=jax.ShapeDtypeStruct((Mp, Np), out_dtype),
        grid_spec=pl.GridSpec(
            grid=(Mp // tm_eff,),
            in_specs=[pl.BlockSpec((tm_eff, Kp), lambda i: (i, 0)),
                      pl.BlockSpec((Kp, Np), lambda i: (0, 0))],
            out_specs=pl.BlockSpec((tm_eff, Np), lambda i: (i, 0))),
        compiler_params=_params(),
        cost_estimate=pl.CostEstimate(
            flops=2 * Mp * Kp * Np, transcendentals=0,
            bytes_accessed=4 * (Mp * Kp + Kp * Np + Mp * Np)),
    )(xp, wp)
    if (Mp, Np) != (M, N):
        out = out[:M, :N]
    return out


# ---------------------------------------------------------------------------
# Multi-head scaled dot-product attention, one grid step per batch element.
# valid_lens lives in SMEM (scalar prefetch); the additive mask is built in-kernel.
# Heads are addressed with static slices of the (S, H*Dh) blocks, so no XLA
# transpose_qkv / transpose_output round-trips are needed.
# ---------------------------------------------------------------------------
def _attention_kernel(vl_ref, q_ref, kv_ref, o_ref, *, num_heads, head_dim, hd,
                      sq, sk, scale, causal):
    b = pl.program_id(0)
    limit = vl_ref[b]                                           # SMEM scalar
    col = jax.lax.broadcasted_iota(jnp.int32, (sq, sk), 1)
    valid = col < limit
    if causal:                                                  # dec_valid_lens = arange(1..Sq)
        row = jax.lax.broadcasted_iota(jnp.int32, (sq, sk), 0)
        valid = jnp.logical_and(valid, col <= row)
    bias = jnp.where(valid, 0.0, -1e6).astype(jnp.float32)      # masked_softmax value

    qb = q_ref[0, :, :].astype(jnp.float32)                     # (sq, H*Dh)
    kvb = kv_ref[0, :, :].astype(jnp.float32)                   # (sk, 2*H*Dh) = [K | V]
    outs = []
    for h in range(num_heads):                                  # static unroll over heads
        lo, hi = h * head_dim, (h + 1) * head_dim
        qh = qb[:, lo:hi]
        kh = kvb[:, lo:hi]
        vh = kvb[:, hd + lo:hd + hi]
        s = jax.lax.dot_general(qh, kh, (((1,), (1,)), ((), ())),
                                preferred_element_type=jnp.float32)
        s = s * scale + bias
        s = s - jnp.max(s, axis=-1, keepdims=True)
        p = jnp.exp(s)
        p = p * pl.reciprocal(jnp.sum(p, axis=-1, keepdims=True), approx=True)
        outs.append(jnp.dot(p, vh, preferred_element_type=jnp.float32))
    # single lane-dense (sq, H*Dh) store
    o_ref[0, :, :] = jnp.concatenate(outs, axis=-1).astype(o_ref.dtype)


def dot_product_attention(q, kv, valid_lens, num_heads, *, causal=False):
    """q: (B, Sq, H*Dh); kv: (B, Sk, 2*H*Dh) = [K | V]; valid_lens: None or (B,) int."""
    B, Sq, HD = q.shape
    Sk = kv.shape[1]
    Dh = HD // num_heads
    if valid_lens is None:
        vl = jnp.full((B,), Sk, dtype=jnp.int32)
    else:
        assert valid_lens.ndim == 1
        vl = valid_lens.astype(jnp.int32)
    kern = partial(_attention_kernel, num_heads=num_heads, head_dim=Dh, hd=HD,
                   sq=Sq, sk=Sk, scale=1.0 / math.sqrt(Dh), causal=causal)
    return pl.pallas_call(
        kern,
        out_shape=jax.ShapeDtypeStruct((B, Sq, HD), q.dtype),
        grid_spec=pltpu.PrefetchScalarGridSpec(
            num_scalar_prefetch=1,
            grid=(B,),
            in_specs=[pl.BlockSpec((1, Sq, HD), lambda b, vl_r: (b, 0, 0)),
                      pl.BlockSpec((1, Sk, 2 * HD), lambda b, vl_r: (b, 0, 0))],
            out_specs=pl.BlockSpec((1, Sq, HD), lambda b, vl_r: (b, 0, 0))),
        compiler_params=_params(),
        cost_estimate=pl.CostEstimate(
            flops=4 * B * Sq * Sk * HD,
            transcendentals=B * num_heads * Sq * Sk,
            bytes_accessed=4 * B * (2 * Sq * HD + 2 * Sk * HD)),
    )(vl, q, kv)


# ---------------------------------------------------------------------------
# Fused W_o projection + AddNorm:  LayerNorm(residual + attn @ W_o)
# Feature dims are zero-padded to 128; LayerNorm divides by the TRUE width d_true
# and gamma/beta are zero-padded, so padded columns stay exactly zero.
# ---------------------------------------------------------------------------
def _oproj_addnorm_kernel(a_ref, w_ref, r_ref, g_ref, bt_ref, o_ref, *, inv_d, eps):
    y = jnp.dot(a_ref[...], w_ref[...], preferred_element_type=jnp.float32)
    z = r_ref[...].astype(jnp.float32) + y
    mu = jnp.sum(z, axis=-1, keepdims=True) * inv_d
    ms = jnp.sum(z * z, axis=-1, keepdims=True) * inv_d
    inv = jax.lax.rsqrt(ms - mu * mu + eps)
    o_ref[...] = ((z - mu) * inv * g_ref[...].astype(jnp.float32)
                  + bt_ref[...].astype(jnp.float32)).astype(o_ref.dtype)


def oproj_addnorm(attn, wo, residual, gamma, beta, *, d_true, tm=512, eps=1e-5,
                  compute_dtype=None):
    B, S, HD = attn.shape
    HDp, dp = wo.shape
    assert residual.shape[-1] == dp
    M = B * S
    tm_eff = _row_tile(M, tm)
    Mp = _round_up(M, tm_eff)
    a2 = _pad2d(attn.reshape(M, HD), Mp, HDp)
    r2 = _pad2d(residual.reshape(M, dp), Mp, dp)
    if compute_dtype is not None:
        a2 = a2.astype(compute_dtype)
        wo = wo.astype(compute_dtype)
    kern = partial(_oproj_addnorm_kernel, inv_d=1.0 / d_true, eps=eps)
    out = pl.pallas_call(
        kern,
        out_shape=jax.ShapeDtypeStruct((Mp, dp), residual.dtype),
        grid_spec=pl.GridSpec(
            grid=(Mp // tm_eff,),
            in_specs=[pl.BlockSpec((tm_eff, HDp), lambda i: (i, 0)),
                      pl.BlockSpec((HDp, dp), lambda i: (0, 0)),
                      pl.BlockSpec((tm_eff, dp), lambda i: (i, 0)),
                      pl.BlockSpec((1, dp), lambda i: (0, 0)),
                      pl.BlockSpec((1, dp), lambda i: (0, 0))],
            out_specs=pl.BlockSpec((tm_eff, dp), lambda i: (i, 0))),
        compiler_params=_params(),
        cost_estimate=pl.CostEstimate(
            flops=2 * Mp * HDp * dp, transcendentals=Mp,
            bytes_accessed=4 * (Mp * HDp + HDp * dp + 2 * Mp * dp)),
    )(a2, wo, r2, gamma, beta)
    if Mp != M:
        out = out[:M]
    return out.reshape(B, S, dp)


# ---------------------------------------------------------------------------
# Fused PositionWiseFFN + AddNorm: LayerNorm(z + dense2(relu(dense1(z))))
# ---------------------------------------------------------------------------
def _ffn_addnorm_kernel(z_ref, w1_ref, b1_ref, w2_ref, b2_ref, g_ref, bt_ref, o_ref,
                        *, inv_d, eps):
    z = z_ref[...].astype(jnp.float32)
    h = jnp.dot(z.astype(w1_ref.dtype), w1_ref[...],
                preferred_element_type=jnp.float32) + b1_ref[...].astype(jnp.float32)
    h = jnp.maximum(h, 0.0)                                   # ReLU on the VPU
    f = jnp.dot(h.astype(w2_ref.dtype), w2_ref[...],
                preferred_element_type=jnp.float32) + b2_ref[...].astype(jnp.float32)
    zz = z + f
    mu = jnp.sum(zz, axis=-1, keepdims=True) * inv_d
    ms = jnp.sum(zz * zz, axis=-1, keepdims=True) * inv_d
    inv = jax.lax.rsqrt(ms - mu * mu + eps)
    o_ref[...] = ((zz - mu) * inv * g_ref[...].astype(jnp.float32)
                  + bt_ref[...].astype(jnp.float32)).astype(o_ref.dtype)


def ffn_addnorm(z, w1, b1, w2, b2, gamma, beta, *, d_true, tm=512, eps=1e-5,
                compute_dtype=None):
    B, S, dp = z.shape
    dhp = w1.shape[1]
    assert w1.shape[0] == dp and w2.shape == (dhp, dp)
    M = B * S
    tm_eff = _row_tile(M, tm)
    Mp = _round_up(M, tm_eff)
    z2 = _pad2d(z.reshape(M, dp), Mp, dp)
    if compute_dtype is not None:
        w1 = w1.astype(compute_dtype)
        w2 = w2.astype(compute_dtype)
    kern = partial(_ffn_addnorm_kernel, inv_d=1.0 / d_true, eps=eps)
    out = pl.pallas_call(
        kern,
        out_shape=jax.ShapeDtypeStruct((Mp, dp), z.dtype),
        grid_spec=pl.GridSpec(
            grid=(Mp // tm_eff,),
            in_specs=[pl.BlockSpec((tm_eff, dp), lambda i: (i, 0)),
                      pl.BlockSpec((dp, dhp), lambda i: (0, 0)),
                      pl.BlockSpec((1, dhp), lambda i: (0, 0)),
                      pl.BlockSpec((dhp, dp), lambda i: (0, 0)),
                      pl.BlockSpec((1, dp), lambda i: (0, 0)),
                      pl.BlockSpec((1, dp), lambda i: (0, 0)),
                      pl.BlockSpec((1, dp), lambda i: (0, 0))],
            out_specs=pl.BlockSpec((tm_eff, dp), lambda i: (i, 0))),
        compiler_params=_params(),
        cost_estimate=pl.CostEstimate(
            flops=4 * Mp * dp * dhp, transcendentals=Mp,
            bytes_accessed=4 * (2 * Mp * dp + 2 * dp * dhp)),
    )(z2, w1, b1, w2, b2, gamma, beta)
    if Mp != M:
        out = out[:M]
    return out.reshape(B, S, dp)


# ---------------------------------------------------------------------------
# MultiHeadAttention + AddNorm (queries double as the residual, as in DecoderBlock)
# ---------------------------------------------------------------------------
def mha_addnorm(p, queries, keys_values, valid_lens, num_heads, *, causal,
                gamma, beta, d_true, eps=1e-5, compute_dtype=None):
    B, Sq, dp = queries.shape
    Sk = keys_values.shape[1]
    HD = p["wq"].shape[1]
    q = linear(queries.reshape(B * Sq, dp), p["wq"],
               compute_dtype=compute_dtype).reshape(B, Sq, HD)
    kv = linear(keys_values.reshape(B * Sk, dp), p["wkv"],       # fused [W_k | W_v]
                compute_dtype=compute_dtype).reshape(B, Sk, 2 * HD)
    attn = dot_product_attention(q, kv, valid_lens, num_heads, causal=causal)
    return oproj_addnorm(attn, p["wo"], queries, gamma, beta,
                         d_true=d_true, eps=eps, compute_dtype=compute_dtype)


# ---------------------------------------------------------------------------
# DecoderBlock forward (wrapper): pad feature dims once, keep padded throughout.
# ---------------------------------------------------------------------------
def _pad_decoder_params(params, d):
    dp = _round_up(d, _LANE)

    def attn(p):
        HD = p["wq"].shape[1]
        HDp = _round_up(HD, _LANE)
        wkv = jnp.concatenate([p["wk"], p["wv"]], axis=1)
        return {"wq": _pad2d(p["wq"], dp, HD),
                "wkv": _pad2d(wkv, dp, 2 * HD),
                "wo": _pad2d(p["wo"], HDp, dp)}

    dhid = params["ffn_w1"].shape[1]
    dhp = _round_up(dhid, _LANE)
    pp = {
        "attn1": attn(params["attn1"]),
        "attn2": attn(params["attn2"]),
        "ffn_w1": _pad2d(params["ffn_w1"], dp, dhp),
        "ffn_b1": _pad2d(params["ffn_b1"].reshape(1, dhid), 1, dhp),
        "ffn_w2": _pad2d(params["ffn_w2"], dhp, dp),
        "ffn_b2": _pad2d(params["ffn_b2"].reshape(1, d), 1, dp),
    }
    for name in ("ln1", "ln2", "ln3"):
        pp[name + "_g"] = _pad2d(params[name + "_g"].reshape(1, d), 1, dp)
        pp[name + "_b"] = _pad2d(params[name + "_b"].reshape(1, d), 1, dp)
    return pp, dp


def decoder_block_forward(params, X, state, *, i=0, num_heads=4, training=True,
                          eps=1e-5, compute_dtype=None):
    """DecoderBlock.forward: returns (output, new_state)."""
    enc_outputs, enc_valid_lens, caches = state
    caches = list(caches)
    key_values = X if caches[i] is None else jnp.concatenate([caches[i], X], axis=1)
    caches[i] = key_values
    B, S, d = X.shape

    pp, dp = _pad_decoder_params(params, d)
    Xp = _pad_last(X, dp)
    KVp = _pad_last(key_values, dp)
    Ep = _pad_last(enc_outputs, dp)

    # TODO(synk): training-mode nn.Dropout is stochastic; applied as identity (p=0 / eval).
    # Self-attention: dec_valid_lens = arange(1..S) is exactly a causal mask -> built
    # in-kernel; no mask when not training (inference/cache path).
    Y = mha_addnorm(pp["attn1"], Xp, KVp, None, num_heads, causal=training,
                    gamma=pp["ln1_g"], beta=pp["ln1_b"], d_true=d, eps=eps,
                    compute_dtype=compute_dtype)
    # Cross-attention: encoder valid lengths applied in-kernel from SMEM.
    Z = mha_addnorm(pp["attn2"], Y, Ep, enc_valid_lens, num_heads, causal=False,
                    gamma=pp["ln2_g"], beta=pp["ln2_b"], d_true=d, eps=eps,
                    compute_dtype=compute_dtype)
    out_p = ffn_addnorm(Z, pp["ffn_w1"], pp["ffn_b1"], pp["ffn_w2"], pp["ffn_b2"],
                        pp["ln3_g"], pp["ln3_b"], d_true=d, eps=eps,
                        compute_dtype=compute_dtype)
    out = out_p[..., :d]
    return out, (enc_outputs, enc_valid_lens, caches)


# ---------------------------------------------------------------------------
# Pure-JAX reference (same math, no Pallas) for the correctness check
# ---------------------------------------------------------------------------
def _build_mask(valid_lens, B, H, Sq, Sk):
    if valid_lens is None:
        return jnp.zeros((B * H, Sq, Sk), jnp.float32)
    if valid_lens.ndim == 1:
        vl = jnp.repeat(valid_lens, H)
        vl = jnp.broadcast_to(vl[:, None], (B * H, Sq))
    else:
        vl = jnp.repeat(valid_lens, H, axis=0)
    col = jax.lax.broadcasted_iota(jnp.int32, (B * H, Sq, Sk), 2)
    return jnp.where(col < vl[:, :, None], 0.0, -1e6).astype(jnp.float32)


def _ref_mha(p, queries, keys, values, valid_lens, num_heads):
    B, Sq, _ = queries.shape
    Sk = keys.shape[1]
    q = (queries.reshape(B * Sq, -1) @ p["wq"]).reshape(B, Sq, -1)
    k = (keys.reshape(B * Sk, -1) @ p["wk"]).reshape(B, Sk, -1)
    v = (values.reshape(B * Sk, -1) @ p["wv"]).reshape(B, Sk, -1)

    def split(t):
        b, s, _ = t.shape
        return t.reshape(b, s, num_heads, -1).transpose(0, 2, 1, 3).reshape(b * num_heads, s, -1)

    qh, kh, vh = split(q), split(k), split(v)
    Dh = qh.shape[-1]
    mask = _build_mask(valid_lens, B, num_heads, Sq, Sk)
    s = jnp.einsum("bqd,bkd->bqk", qh, kh) / math.sqrt(Dh) + mask
    s = s - jnp.max(s, axis=-1, keepdims=True)
    pw = jnp.exp(s)
    pw = pw / jnp.sum(pw, axis=-1, keepdims=True)
    oh = jnp.einsum("bqk,bkd->bqd", pw, vh)
    o = oh.reshape(B, num_heads, Sq, Dh).transpose(0, 2, 1, 3).reshape(B, Sq, num_heads * Dh)
    return (o.reshape(B * Sq, -1) @ p["wo"]).reshape(B, Sq, -1)


def _ref_addnorm(x, y, g, b, eps=1e-5):
    z = x + y
    mu = z.mean(-1, keepdims=True)
    var = ((z - mu) ** 2).mean(-1, keepdims=True)
    return (z - mu) * jax.lax.rsqrt(var + eps) * g + b


def _ref_decoder_block(params, X, state, *, i=0, num_heads=4, training=True):
    enc_outputs, enc_valid_lens, caches = state
    caches = list(caches)
    key_values = X if caches[i] is None else jnp.concatenate([caches[i], X], axis=1)
    caches[i] = key_values
    B, S, _ = X.shape
    dec_valid_lens = (jnp.tile(jnp.arange(1, S + 1, dtype=jnp.int32)[None, :], (B, 1))
                      if training else None)
    X2 = _ref_mha(params["attn1"], X, key_values, key_values, dec_valid_lens, num_heads)
    Y = _ref_addnorm(X, X2, params["ln1_g"], params["ln1_b"])
    Y2 = _ref_mha(params["attn2"], Y, enc_outputs, enc_outputs, enc_valid_lens, num_heads)
    Z = _ref_addnorm(Y, Y2, params["ln2_g"], params["ln2_b"])
    F = jnp.maximum(Z @ params["ffn_w1"] + params["ffn_b1"], 0.0) @ params["ffn_w2"] \
        + params["ffn_b2"]
    out = _ref_addnorm(Z, F, params["ln3_g"], params["ln3_b"])
    return out, (enc_outputs, enc_valid_lens, caches)


if __name__ == "__main__":
    # DecoderBlock(key=query=value=num_hiddens=32, norm_shape=[32],
    #              ffn_num_input=32, ffn_num_hiddens=64, num_heads=4, dropout=0, i=0)
    B, S = 2, 8
    num_hiddens = 32
    num_heads = 4
    ffn_num_hiddens = 64
    proj = num_hiddens * num_heads          # 128 (per-head dim 32)

    key = jax.random.PRNGKey(0)
    ks = jax.random.split(key, 20)

    def nrm(k, shape, scale=0.1):
        return jax.random.normal(k, shape, dtype=jnp.float32) * scale

    params = {
        "attn1": {"wq": nrm(ks[0], (num_hiddens, proj)), "wk": nrm(ks[1], (num_hiddens, proj)),
                  "wv": nrm(ks[2], (num_hiddens, proj)), "wo": nrm(ks[3], (proj, num_hiddens))},
        "attn2": {"wq": nrm(ks[4], (num_hiddens, proj)), "wk": nrm(ks[5], (num_hiddens, proj)),
                  "wv": nrm(ks[6], (num_hiddens, proj)), "wo": nrm(ks[7], (proj, num_hiddens))},
        "ln1_g": 1.0 + nrm(ks[8], (num_hiddens,)), "ln1_b": nrm(ks[9], (num_hiddens,)),
        "ln2_g": 1.0 + nrm(ks[10], (num_hiddens,)), "ln2_b": nrm(ks[11], (num_hiddens,)),
        "ln3_g": 1.0 + nrm(ks[12], (num_hiddens,)), "ln3_b": nrm(ks[13], (num_hiddens,)),
        "ffn_w1": nrm(ks[14], (num_hiddens, ffn_num_hiddens)),
        "ffn_b1": nrm(ks[15], (ffn_num_hiddens,)),
        "ffn_w2": nrm(ks[16], (ffn_num_hiddens, num_hiddens)),
        "ffn_b2": nrm(ks[17], (num_hiddens,)),
    }

    X = jax.random.normal(ks[18], (B, S, num_hiddens), dtype=jnp.float32)
    enc_outputs = jax.random.normal(ks[19], (B, S, num_hiddens), dtype=jnp.float32)
    enc_valid_lens = jnp.array([8, 5], dtype=jnp.int32)
    state = (enc_outputs, enc_valid_lens, [None])        # training step (cache is None)

    out, new_state = decoder_block_forward(params, X, state, i=0,
                                           num_heads=num_heads, training=True)
    out = jax.block_until_ready(out)

    ref_out, _ = _ref_decoder_block(params, X, state, i=0,
                                    num_heads=num_heads, training=True)
    assert out.shape == (B, S, num_hiddens)
    assert new_state[2][0].shape == (B, S, num_hiddens)
    max_err = float(jnp.max(jnp.abs(out - ref_out)))
    # tolerance slightly widened vs. strict f32: softmax uses the EUP approx reciprocal
    assert jnp.allclose(out, ref_out, atol=5e-3, rtol=5e-3), f"max abs err {max_err}"

    print("KERNEL_OK")
</pallas_src>

<mosaic_0001>
module attributes {stable_mosaic.version = 11 : i64} {
  func.func @_linear_kernel(%arg0: i32, %arg1: memref<16x128xf32, #tpu.memory_space<vmem>>, %arg2: memref<128x128xf32, #tpu.memory_space<vmem>>, %arg3: memref<16x128xf32, #tpu.memory_space<vmem>>) attributes {dimension_semantics = [#tpu.dimension_semantics<parallel>], iteration_bounds = array<i64: 1>, scalar_prefetch = 0 : i64, scratch_operands = 0 : i64, tpu.core_type = #tpu.core_type<tc>, window_params = [{transform_indices = @transform_0, window_bounds = array<i64: 16, 128>}, {pipeline_mode = #tpu.pipeline_mode<synchronous>, transform_indices = @transform_1, window_bounds = array<i64: 128, 128>}, {transform_indices = @transform_2, window_bounds = array<i64: 16, 128>}]} {
    %c0 = arith.constant 0 : index
    %c0_0 = arith.constant 0 : index
    %0 = vector.load %arg1[%c0, %c0_0] : memref<16x128xf32, #tpu.memory_space<vmem>>, vector<16x128xf32>
    %c0_1 = arith.constant 0 : index
    %c0_2 = arith.constant 0 : index
    %1 = vector.load %arg2[%c0_1, %c0_2] : memref<128x128xf32, #tpu.memory_space<vmem>>, vector<128x128xf32>
    %cst = arith.constant dense<0.000000e+00> : vector<16x128xf32>
    %2 = tpu.matmul %0, %1, %cst {dimension_numbers = #tpu.dot_dimension_numbers<[1], [0], [0], [1], [0, 0, 1, 1], [], []>} : vector<16x128xf32>, vector<128x128xf32>, vector<16x128xf32> -> vector<16x128xf32>
    %c0_3 = arith.constant 0 : index
    %c0_4 = arith.constant 0 : index
    %3 = vector.load %arg3[%c0_3, %c0_4] : memref<16x128xf32, #tpu.memory_space<vmem>>, vector<16x128xf32>
    tpu.vector_store %arg3[%c0_3, %c0_4], %2 {strides = array<i32>} : memref<16x128xf32, #tpu.memory_space<vmem>>, vector<16x128xf32>,
    return
  }
  func.func @transform_0(%arg0: i32) -> (i32, i32) {
    %c0_i32 = arith.constant 0 : i32
    %c0_i32_0 = arith.constant 0 : i32
    return %arg0, %c0_i32 : i32, i32
  }
  func.func @transform_1(%arg0: i32) -> (i32, i32) {
    %c0_i32 = arith.constant 0 : i32
    %c0_i32_0 = arith.constant 0 : i32
    %c0_i32_1 = arith.constant 0 : i32
    return %c0_i32, %c0_i32_0 : i32, i32
  }
  func.func @transform_2(%arg0: i32) -> (i32, i32) {
    %c0_i32 = arith.constant 0 : i32
    %c0_i32_0 = arith.constant 0 : i32
    return %arg0, %c0_i32 : i32, i32
  }
}

</mosaic_0001>

<llo_original>
// kernel: tpu_custom_call.1
$region0: #{tpu_custom_call.1}
  #allocation0 [shape = 'u32[]', space=smem, size = 0x4, offset = 0x4, fixed_abs, tag = 'smem constant byte address 0x4 - core index']
  #allocation1 [shape = 'u32[144,128]{1,0:T(1,128)}', space=vmem, size = 0x12000, scoped, tag = 'internal scratch']
  %s0 = inlined_call_operand.hbm [shape: f32[16,128], index: 0, kind: input, shape index: {}]
  %s1 = inlined_call_operand.hbm [shape: f32[128,128], index: 1, kind: input, shape index: {}]
  %s2 = inlined_call_operand.hbm [shape: f32[16,128], index: 2, kind: output, shape index: {}]
  %s3 = sld [smem:[#allocation0]]
  $region26: #{tpu_custom_call.1} parent=0
    _
  %s5 = ssub.s32 1, %s3
  %s6 = scalar_select 0, %s5, %s3
  $region1: #{tpu_custom_call.1} parent=0
    #allocation2 [shape = 'u8[8192]{0}', space=vmem, size = 0x2000, scoped, tag = 'input window, operand 0, single buffered']
    #allocation3 [shape = 's32[1]{0}', space=sflag, size = 0x4, scoped, tag = 'scoped memory for tpu_custom_call.1']
    #allocation4 [shape = 's32[1]{0}', space=sflag, size = 0x4, scoped, tag = 'scoped memory for tpu_custom_call.1']
    #allocation5 [shape = 'u8[65536]{0}', space=vmem, size = 0x10000, scoped, tag = 'input window, operand 1, single buffered']
    #allocation6 [shape = 's32[1]{0}', space=sflag, size = 0x4, scoped, tag = 'scoped memory for tpu_custom_call.1']
    #allocation7 [shape = 'u8[8192]{0}', space=vmem, size = 0x2000, scoped, tag = 'output window, operand 0, single buffered']
    %7 = vsyncpa [#allocation3], 0
    %8 = vsyncpa [#allocation6], 0
    %9 = vsyncpa [#allocation4], 0
    // Predicated region
    $region2: #{tpu_custom_call.1} parent=1 // pred_check
      _
    $region3: #{tpu_custom_call.1} parent=1 // pred_check_branch
      %11 = sbr.rel (0) target = $region5
    $region4: #{tpu_custom_call.1} parent=1 // pred_region
      %s13 = ssub.s32 256, 256
      %14 = vsyncadd [#allocation3], %s13
      %s15 = sshll.u32 [#allocation2], 4
      %s16 = int_to_ptr.vmem [resolvable:$true] %s15
      %21 = dma.hbm_to_vmem [thread:$0]  %s0, 256, %s16, [#allocation3], 128, 128, 8
    $region5: #{tpu_custom_call.1} parent=1 // pred_fallthru
      _
    // Predicated region
    $region6: #{tpu_custom_call.1} parent=1 // pred_check
      _
    $region7: #{tpu_custom_call.1} parent=1 // pred_check_branch
      %23 = sbr.rel (0) target = $region9
    $region8: #{tpu_custom_call.1} parent=1 // pred_region
      %s25 = ssub.s32 2048, 2048
      %26 = vsyncadd [#allocation6], %s25
      %s27 = sshll.u32 [#allocation5], 4
      %s28 = int_to_ptr.vmem [resolvable:$true] %s27
      %33 = dma.hbm_to_vmem [thread:$0]  %s1, 2048, %s28, [#allocation6], 128, 128, 8
    $region9: #{tpu_custom_call.1} parent=1 // pred_fallthru
      _
    // Predicated region
    $region10: #{tpu_custom_call.1} parent=1 // pred_check
      _
    $region11: #{tpu_custom_call.1} parent=1 // pred_check_branch
      %35 = sbr.rel (0) target = $region13
    $region12: #{tpu_custom_call.1} parent=1 // pred_region
      %36 = dma.done [#allocation3], 256
    $region13: #{tpu_custom_call.1} parent=1 // pred_fallthru
      _
    // Predicated region
    $region14: #{tpu_custom_call.1} parent=1 // pred_check
      _
    $region15: #{tpu_custom_call.1} parent=1 // pred_check_branch
      %38 = sbr.rel (0) target = $region17
    $region16: #{tpu_custom_call.1} parent=1 // pred_region
      %39 = dma.done [#allocation6], 2048
    $region17: #{tpu_custom_call.1} parent=1 // pred_fallthru
      _
    %v40 = vld [vmem:[#allocation2] sm:$0xff]
    %v41 = vld [vmem:[#allocation2 + $0x8] sm:$0xff]
    %v42 = vld [vmem:[#allocation5] sm:$0xff]
    %v43 = vld [vmem:[#allocation5 + $0x8] sm:$0xff]
    %v44 = vld [vmem:[#allocation5 + $0x10] sm:$0xff]
    %v45 = vld [vmem:[#allocation5 + $0x18] sm:$0xff]
    %v46 = vld [vmem:[#allocation5 + $0x20] sm:$0xff]
    %v47 = vld [vmem:[#allocation5 + $0x28] sm:$0xff]
    %v48 = vld [vmem:[#allocation5 + $0x30] sm:$0xff]
    %v49 = vld [vmem:[#allocation5 + $0x38] sm:$0xff]
    %v50 = vld [vmem:[#allocation5 + $0x40] sm:$0xff]
    %v51 = vld [vmem:[#allocation5 + $0x48] sm:$0xff]
    %v52 = vld [vmem:[#allocation5 + $0x50] sm:$0xff]
    %v53 = vld [vmem:[#allocation5 + $0x58] sm:$0xff]
    %v54 = vld [vmem:[#allocation5 + $0x60] sm:$0xff]
    %v55 = vld [vmem:[#allocation5 + $0x68] sm:$0xff]
    %v56 = vld [vmem:[#allocation5 + $0x70] sm:$0xff]
    %v57 = vld [vmem:[#allocation5 + $0x78] sm:$0xff]
    %58 = vmatprep.subr.mxu0 0.0
    %59 = vmatpush1.msra.mxu0 %v57
    %60 = vmatprep.subr.mxu0 0.0
    %61 = vmatpush1.msra.mxu0 %v56
    %62 = vmatprep.subr.mxu0 0.0
    %63 = vmatpush1.msra.mxu0 %v55
    %64 = vmatprep.subr.mxu0 0.0
    %65 = vmatpush1.msra.mxu0 %v54
    %66 = vmatprep.subr.mxu0 0.0
    %67 = vmatpush1.msra.mxu0 %v53
    %68 = vmatprep.subr.mxu0 0.0
    %69 = vmatpush1.msra.mxu0 %v52
    %70 = vmatprep.subr.mxu0 0.0
    %71 = vmatpush1.msra.mxu0 %v51
    %72 = vmatprep.subr.mxu0 0.0
    %73 = vmatpush1.msra.mxu0 %v50
    %74 = vmatprep.subr.mxu0 0.0
    %75 = vmatpush1.msra.mxu0 %v49
    %76 = vmatprep.subr.mxu0 0.0
    %77 = vmatpush1.msra.mxu0 %v48
    %78 = vmatprep.subr.mxu0 0.0
    %79 = vmatpush1.msra.mxu0 %v47
    %80 = vmatprep.subr.mxu0 0.0
    %81 = vmatpush1.msra.mxu0 %v46
    %82 = vmatprep.subr.mxu0 0.0
    %83 = vmatpush1.msra.mxu0 %v45
    %84 = vmatprep.subr.mxu0 0.0
    %85 = vmatpush1.msra.mxu0 %v44
    %86 = vmatprep.subr.mxu0 0.0
    %87 = vmatpush1.msra.mxu0 %v43
    %88 = vmatprep.subr.mxu0 0.0
    %89 = vmatpush1.msra.mxu0 %v42
    %90 = vmatprep.subr.mxu0 0.0
    %91 = vmatpush2.msra.mxu0 0.0
    %92 = vmatprep.subr.mxu0 0.0
    %93 = vmatpush2.msra.mxu0 0.0
    %94 = vmatprep.subr.mxu0 0.0
    %95 = vmatpush2.msra.mxu0 0.0
    %96 = vmatprep.subr.mxu0 0.0
    %97 = vmatpush2.msra.mxu0 0.0
    %98 = vmatprep.subr.mxu0 0.0
    %99 = vmatpush2.msra.mxu0 0.0
    %100 = vmatprep.subr.mxu0 0.0
    %101 = vmatpush2.msra.mxu0 0.0
    %102 = vmatprep.subr.mxu0 0.0
    %103 = vmatpush2.msra.mxu0 0.0
    %104 = vmatprep.subr.mxu0 0.0
    %105 = vmatpush2.msra.mxu0 0.0
    %106 = vmatprep.subr.mxu0 0.0
    %107 = vmatpush2.msra.mxu0 0.0
    %108 = vmatprep.subr.mxu0 0.0
    %109 = vmatpush2.msra.mxu0 0.0
    %110 = vmatprep.subr.mxu0 0.0
    %111 = vmatpush2.msra.mxu0 0.0
    %112 = vmatprep.subr.mxu0 0.0
    %113 = vmatpush2.msra.mxu0 0.0
    %114 = vmatprep.subr.mxu0 0.0
    %115 = vmatpush2.msra.mxu0 0.0
    %116 = vmatprep.subr.mxu0 0.0
    %117 = vmatpush2.msra.mxu0 0.0
    %118 = vmatprep.subr.mxu0 0.0
    %119 = vmatpush2.msra.mxu0 0.0
    %120 = vmatprep.subr.mxu0 0.0
    %121 = vmatpush2.msra.mxu0 0.0
    %122 = vmatprep.mubr.f32.mxu0 0.0
    %123 = vmatmul.mubr.f32.gmra.mxu0 %v40
    %v124 = vpop.f32.mrf.mxu0
    %v125 = vadd.f32 0.0, %v124
    %v126 = vpop.f32.mrf.mxu0
    %127 = vmatprep.mubr.f32.mxu0 0.0
    %128 = vmatmul.mubr.f32.gmra.mxu0 %v41
    %v129 = vpop.f32.mrf.mxu0
    %v130 = vadd.f32 0.0, %v129
    %v131 = vpop.f32.mrf.mxu0
    %132 = vdwg.mxu0
    %133 = vst [vmem:[#allocation7] sm:$0xff] %v125
    %134 = vst [vmem:[#allocation7 + $0x8] sm:$0xff] %v130
    // Predicated region
    $region18: #{tpu_custom_call.1} parent=1 // pred_check
      _
    $region19: #{tpu_custom_call.1} parent=1 // pred_check_branch
      %136 = sbr.rel (0) target = $region21
    $region20: #{tpu_custom_call.1} parent=1 // pred_region
      %s138 = ssub.s32 256, 256
      %139 = vsyncadd [#allocation4], %s138
      %s140 = sshll.u32 [#allocation7], 4
      %s141 = int_to_ptr.vmem [resolvable:$true] %s140
      %146 = dma.vmem_to_hbm [thread:$0]  %s141, 256, %s2, [#allocation4], 128, 128, 8
    $region21: #{tpu_custom_call.1} parent=1 // pred_fallthru
      _
    // Predicated region
    $region22: #{tpu_custom_call.1} parent=1 // pred_check
      _
    $region23: #{tpu_custom_call.1} parent=1 // pred_check_branch
      %148 = sbr.rel (0) target = $region25
    $region24: #{tpu_custom_call.1} parent=1 // pred_region
      %149 = dma.done [#allocation4], 256
    $region25: #{tpu_custom_call.1} parent=1 // pred_fallthru
      _
    %150 = vsyncpa [#allocation3], 1
    %151 = vsyncpa [#allocation6], 1
    %152 = vsyncpa [#allocation4], 1

</llo_original>
